<compile_context>
chip_gen: v6e
topology: v6e:2x2x1
jax: 0.10.0
libtpu: 0.0.40
codegen_flags: <defaults>
</compile_context>

<pallas_src>
import jax
import jax.numpy as jnp
from jax import lax
from jax.experimental import pallas as pl
from jax.experimental.pallas import tpu as pltpu

INPUT_SIZE = 29
NUM_CLASSES = 1
H1, H2, H3 = 90, 30, 15
OUT_PAD = 128          # lane-dense output width
BN_EPS = 1e-5


# ---------------------------------------------------------------------------
# Shared math helpers
# ---------------------------------------------------------------------------
def _softplus(x):
    # PyTorch F.softplus(beta=1, threshold=20): x > 20 -> x, else log(1+exp(x))
    return jnp.where(x > 20.0, x, jnp.log1p(jnp.exp(jnp.minimum(x, 20.0))))


# ---------------------------------------------------------------------------
# Kernel
# ---------------------------------------------------------------------------
def net_kernel(x_ref, w1_ref, w2_ref, w3_ref, wf_ref, vec_ref, out_ref):
    x = x_ref[...]                       # (B, 29) f32
    v = vec_ref[...]                     # (8, 180) packed vectors

    def bn(y, g, be):
        # Training-mode BN folded into one FMA; single-pass variance.
        mean = jnp.mean(y, axis=0, keepdims=True)
        msq = jnp.mean(y * y, axis=0, keepdims=True)
        var = msq - mean * mean
        scale = g * lax.rsqrt(var + BN_EPS)        # rsqrt -> EUP slot
        shift = be - mean * scale
        return y * scale + shift

    def act(y):
        # First half of lanes = branch 1 (ReLU), second half = branch 2 (softplus).
        half = y.shape[1] // 2
        lane = lax.broadcasted_iota(jnp.int32, y.shape, dimension=1)
        return jnp.where(lane < half, jnp.maximum(y, 0.0), _softplus(y))

    # Layer 1: (B,29) @ (29,180)   [w11.T | w21.T]
    h = jnp.dot(x, w1_ref[...], preferred_element_type=jnp.float32)
    h = act(bn(h, v[0:1, :], v[1:2, :]))                       # (B, 180)

    # Layer 2: (B,180) @ (180,60)  blockdiag(w12.T, w22.T)
    h = jnp.dot(h, w2_ref[...], preferred_element_type=jnp.float32)
    h = act(bn(h, v[2:3, 0:2 * H2], v[3:4, 0:2 * H2]))          # (B, 60)

    # Layer 3: (B,60) @ (60,30)    blockdiag(w13.T, w23.T)
    h = jnp.dot(h, w3_ref[...], preferred_element_type=jnp.float32)
    h = act(bn(h, v[4:5, 0:2 * H3], v[5:6, 0:2 * H3]))          # (B, 30) == concat([x1, x2])

    # Final: (B,30) @ (30,128) + b3 (only column 0 is non-zero), ReLU.
    out = jnp.dot(h, wf_ref[...], preferred_element_type=jnp.float32)
    out = out + v[6:7, 0:OUT_PAD]
    out_ref[...] = jnp.maximum(out, 0.0)


# ---------------------------------------------------------------------------
# One-time parameter packing (pre-transpose, fuse branches, drop dead biases)
# ---------------------------------------------------------------------------
def pack_params(p):
    # Layer 1: concat along the output axis.
    w1 = jnp.concatenate([p["w11"].T, p["w21"].T], axis=1)          # (29, 180)

    # Layers 2/3: block-diagonal so the two branches never mix.
    w2 = jnp.zeros((2 * H1, 2 * H2), jnp.float32)
    w2 = w2.at[:H1, :H2].set(p["w12"].T).at[H1:, H2:].set(p["w22"].T)  # (180, 60)

    w3 = jnp.zeros((2 * H2, 2 * H3), jnp.float32)
    w3 = w3.at[:H2, :H3].set(p["w13"].T).at[H2:, H3:].set(p["w23"].T)  # (60, 30)

    # Final layer, padded to a lane-dense 128-wide output.
    wf = jnp.zeros((2 * H3, OUT_PAD), jnp.float32)
    wf = wf.at[:, :NUM_CLASSES].set(p["w3"].T)                      # (30, 128)

    # Vector slab: gamma/beta tiled for both branches, plus b3 at [6, 0].
    vec = jnp.zeros((8, 2 * H1), jnp.float32)
    vec = vec.at[0, :].set(jnp.tile(p["g1"].reshape(-1), 2))
    vec = vec.at[1, :].set(jnp.tile(p["be1"].reshape(-1), 2))
    vec = vec.at[2, :2 * H2].set(jnp.tile(p["g2"].reshape(-1), 2))
    vec = vec.at[3, :2 * H2].set(jnp.tile(p["be2"].reshape(-1), 2))
    vec = vec.at[4, :2 * H3].set(jnp.tile(p["g3"].reshape(-1), 2))
    vec = vec.at[5, :2 * H3].set(jnp.tile(p["be3"].reshape(-1), 2))
    vec = vec.at[6, :NUM_CLASSES].set(p["b3"].reshape(-1))
    # NOTE: b11..b23 are intentionally omitted — training-mode BN cancels them.

    return dict(w1=w1, w2=w2, w3=w3, wf=wf, vec=vec)


# ---------------------------------------------------------------------------
# Wrapper
# ---------------------------------------------------------------------------
def net_forward(x, packed):
    """x: (B, 29) f32; packed: output of pack_params()."""
    b = x.shape[0]
    ordered = (x, packed["w1"], packed["w2"], packed["w3"],
               packed["wf"], packed["vec"])

    in_specs = [pl.BlockSpec(memory_space=pltpu.MemorySpace.VMEM)
                for _ in ordered]
    out_spec = pl.BlockSpec(memory_space=pltpu.MemorySpace.VMEM)

    out = pl.pallas_call(
        net_kernel,
        out_shape=jax.ShapeDtypeStruct((b, OUT_PAD), jnp.float32),
        in_specs=in_specs,
        out_specs=out_spec,
    )(*ordered)
    return out[:, :NUM_CLASSES]


# ---------------------------------------------------------------------------
# Deterministic parameter init (PyTorch-style uniform(-1/sqrt(fan_in), ...))
# ---------------------------------------------------------------------------
def init_params(key):
    def linear_init(k, out_f, in_f):
        kw, kb = jax.random.split(k)
        bound = 1.0 / jnp.sqrt(in_f)
        w = jax.random.uniform(kw, (out_f, in_f), jnp.float32, -bound, bound)
        b = jax.random.uniform(kb, (1, out_f), jnp.float32, -bound, bound)
        return w, b

    keys = jax.random.split(key, 13)
    w11, b11 = linear_init(keys[0], H1, INPUT_SIZE)
    w12, b12 = linear_init(keys[1], H2, H1)
    w13, b13 = linear_init(keys[2], H3, H2)
    w21, b21 = linear_init(keys[3], H1, INPUT_SIZE)
    w22, b22 = linear_init(keys[4], H2, H1)
    w23, b23 = linear_init(keys[5], H3, H2)
    w3, b3 = linear_init(keys[6], NUM_CLASSES, 2 * H3)

    # BN affine params: non-trivial, deterministic, independent keys.
    g1 = 1.0 + 0.1 * jax.random.normal(keys[7], (1, H1), jnp.float32)
    be1 = 0.1 * jax.random.normal(keys[8], (1, H1), jnp.float32)
    g2 = 1.0 + 0.1 * jax.random.normal(keys[9], (1, H2), jnp.float32)
    be2 = 0.1 * jax.random.normal(keys[10], (1, H2), jnp.float32)
    g3 = 1.0 + 0.1 * jax.random.normal(keys[11], (1, H3), jnp.float32)
    be3 = 0.1 * jax.random.normal(keys[12], (1, H3), jnp.float32)

    return dict(
        w11=w11, b11=b11, w12=w12, b12=b12, w13=w13, b13=b13,
        w21=w21, b21=b21, w22=w22, b22=b22, w23=w23, b23=b23,
        w3=w3, b3=b3,
        g1=g1, be1=be1, g2=g2, be2=be2, g3=g3, be3=be3,
    )


# ---------------------------------------------------------------------------
# Pure-JAX reference (faithful to the PyTorch module, training-mode BN,
# biases included, separate BN calls per branch)
# ---------------------------------------------------------------------------
def net_reference(x, p):
    def lin(v, w, b):
        return v @ w.T + b

    def bn_ref(y, g, be):
        mean = jnp.mean(y, axis=0, keepdims=True)
        var = jnp.mean((y - mean) ** 2, axis=0, keepdims=True)
        return (y - mean) * lax.rsqrt(var + BN_EPS) * g + be

    x1 = jax.nn.relu(bn_ref(lin(x, p["w11"], p["b11"]), p["g1"], p["be1"]))
    x1 = jax.nn.relu(bn_ref(lin(x1, p["w12"], p["b12"]), p["g2"], p["be2"]))
    x1 = jax.nn.relu(bn_ref(lin(x1, p["w13"], p["b13"]), p["g3"], p["be3"]))
    x2 = _softplus(bn_ref(lin(x, p["w21"], p["b21"]), p["g1"], p["be1"]))
    x2 = _softplus(bn_ref(lin(x2, p["w22"], p["b22"]), p["g2"], p["be2"]))
    x2 = _softplus(bn_ref(lin(x2, p["w23"], p["b23"]), p["g3"], p["be3"]))
    xc = jnp.concatenate([x1, x2], axis=1)
    return jax.nn.relu(lin(xc, p["w3"], p["b3"]))


if __name__ == "__main__":
    key = jax.random.PRNGKey(0)
    kx, kp = jax.random.split(key)

    B = 8  # small batch (>1 so training-mode BN is well defined)
    x = jax.random.normal(kx, (B, INPUT_SIZE), jnp.float32)
    params = init_params(kp)
    packed = pack_params(params)   # one-time packing, outside the kernel

    out = net_forward(x, packed)
    out = jax.block_until_ready(out)

    ref = net_reference(x, params)
    assert out.shape == (B, NUM_CLASSES)
    err = jnp.max(jnp.abs(out - ref))
    assert jnp.allclose(out, ref, atol=1e-4, rtol=1e-4), f"mismatch: max abs err {err}"
    print("KERNEL_OK")
</pallas_src>

<mosaic_0001>
module attributes {stable_mosaic.version = 11 : i64} {
  func.func @net_kernel(%arg0: memref<8x29xf32, #tpu.memory_space<vmem>>, %arg1: memref<29x180xf32, #tpu.memory_space<vmem>>, %arg2: memref<180x60xf32, #tpu.memory_space<vmem>>, %arg3: memref<60x30xf32, #tpu.memory_space<vmem>>, %arg4: memref<30x128xf32, #tpu.memory_space<vmem>>, %arg5: memref<8x180xf32, #tpu.memory_space<vmem>>, %arg6: memref<8x128xf32, #tpu.memory_space<vmem>>) attributes {dimension_semantics = [], scalar_prefetch = 0 : i64, scratch_operands = 0 : i64, tpu.core_type = #tpu.core_type<tc>} {
    %c0 = arith.constant 0 : index
    %c0_0 = arith.constant 0 : index
    %0 = vector.load %arg0[%c0, %c0_0] : memref<8x29xf32, #tpu.memory_space<vmem>>, vector<8x29xf32>
    %c0_1 = arith.constant 0 : index
    %c0_2 = arith.constant 0 : index
    %1 = vector.load %arg5[%c0_1, %c0_2] : memref<8x180xf32, #tpu.memory_space<vmem>>, vector<8x180xf32>
    %c0_3 = arith.constant 0 : index
    %c0_4 = arith.constant 0 : index
    %2 = vector.load %arg1[%c0_3, %c0_4] : memref<29x180xf32, #tpu.memory_space<vmem>>, vector<29x180xf32>
    %cst = arith.constant dense<0.000000e+00> : vector<8x180xf32>
    %3 = tpu.matmul %0, %2, %cst {dimension_numbers = #tpu.dot_dimension_numbers<[1], [0], [0], [1], [0, 0, 1, 1], [], []>} : vector<8x29xf32>, vector<29x180xf32>, vector<8x180xf32> -> vector<8x180xf32>
    %4 = vector.extract_strided_slice %1 {offsets = [0, 0], sizes = [1, 180], strides = [1, 1]} : vector<8x180xf32> to vector<1x180xf32>
    %5 = vector.extract_strided_slice %1 {offsets = [1, 0], sizes = [1, 180], strides = [1, 1]} : vector<8x180xf32> to vector<1x180xf32>
    %cst_5 = arith.constant dense<0.000000e+00> : vector<180xf32>
    %6 = vector.multi_reduction <add>, %3, %cst_5 [0] : vector<8x180xf32> to vector<180xf32>
    %7 = vector.shape_cast %6 : vector<180xf32> to vector<1x180xf32>
    %cst_6 = arith.constant 8.000000e+00 : f32
    %8 = vector.broadcast %cst_6 : f32 to vector<1x180xf32>
    %9 = arith.divf %7, %8 : vector<1x180xf32>
    %10 = arith.mulf %3, %3 : vector<8x180xf32>
    %cst_7 = arith.constant dense<0.000000e+00> : vector<180xf32>
    %11 = vector.multi_reduction <add>, %10, %cst_7 [0] : vector<8x180xf32> to vector<180xf32>
    %12 = vector.shape_cast %11 : vector<180xf32> to vector<1x180xf32>
    %cst_8 = arith.constant 8.000000e+00 : f32
    %13 = vector.broadcast %cst_8 : f32 to vector<1x180xf32>
    %14 = arith.divf %12, %13 : vector<1x180xf32>
    %15 = arith.mulf %9, %9 : vector<1x180xf32>
    %16 = arith.subf %14, %15 : vector<1x180xf32>
    %cst_9 = arith.constant 9.99999974E-6 : f32
    %17 = vector.broadcast %cst_9 : f32 to vector<1x180xf32>
    %18 = arith.addf %16, %17 : vector<1x180xf32>
    %19 = math.rsqrt %18 : vector<1x180xf32>
    %20 = arith.mulf %4, %19 : vector<1x180xf32>
    %21 = arith.mulf %9, %20 : vector<1x180xf32>
    %22 = arith.subf %5, %21 : vector<1x180xf32>
    %23 = vector.broadcast %20 : vector<1x180xf32> to vector<8x180xf32>
    %24 = arith.mulf %3, %23 : vector<8x180xf32>
    %25 = vector.broadcast %22 : vector<1x180xf32> to vector<8x180xf32>
    %26 = arith.addf %24, %25 : vector<8x180xf32>
    %27 = tpu.iota {dimensions = array<i32: 1>} : vector<8x180xi32>
    %c90_i32 = arith.constant 90 : i32
    %28 = vector.broadcast %c90_i32 : i32 to vector<8x180xi32>
    %29 = arith.cmpi slt, %27, %28 : vector<8x180xi32>
    %cst_10 = arith.constant 0.000000e+00 : f32
    %30 = vector.broadcast %cst_10 : f32 to vector<8x180xf32>
    %31 = arith.maximumf %26, %30 : vector<8x180xf32>
    %cst_11 = arith.constant 2.000000e+01 : f32
    %32 = vector.broadcast %cst_11 : f32 to vector<8x180xf32>
    %33 = arith.cmpf ogt, %26, %32 : vector<8x180xf32>
    %cst_12 = arith.constant 2.000000e+01 : f32
    %34 = vector.broadcast %cst_12 : f32 to vector<8x180xf32>
    %35 = arith.minimumf %26, %34 : vector<8x180xf32>
    %36 = math.exp %35 : vector<8x180xf32>
    %37 = math.log1p %36 : vector<8x180xf32>
    %38 = arith.select %33, %26, %37 : vector<8x180xi1>, vector<8x180xf32>
    %39 = arith.select %29, %31, %38 : vector<8x180xi1>, vector<8x180xf32>
    %c0_13 = arith.constant 0 : index
    %c0_14 = arith.constant 0 : index
    %40 = vector.load %arg2[%c0_13, %c0_14] : memref<180x60xf32, #tpu.memory_space<vmem>>, vector<180x60xf32>
    %cst_15 = arith.constant dense<0.000000e+00> : vector<8x60xf32>
    %41 = tpu.matmul %39, %40, %cst_15 {dimension_numbers = #tpu.dot_dimension_numbers<[1], [0], [0], [1], [0, 0, 1, 1], [], []>} : vector<8x180xf32>, vector<180x60xf32>, vector<8x60xf32> -> vector<8x60xf32>
    %42 = vector.extract_strided_slice %1 {offsets = [2, 0], sizes = [1, 60], strides = [1, 1]} : vector<8x180xf32> to vector<1x60xf32>
    %43 = vector.extract_strided_slice %1 {offsets = [3, 0], sizes = [1, 60], strides = [1, 1]} : vector<8x180xf32> to vector<1x60xf32>
    %cst_16 = arith.constant dense<0.000000e+00> : vector<60xf32>
    %44 = vector.multi_reduction <add>, %41, %cst_16 [0] : vector<8x60xf32> to vector<60xf32>
    %45 = vector.shape_cast %44 : vector<60xf32> to vector<1x60xf32>
    %cst_17 = arith.constant 8.000000e+00 : f32
    %46 = vector.broadcast %cst_17 : f32 to vector<1x60xf32>
    %47 = arith.divf %45, %46 : vector<1x60xf32>
    %48 = arith.mulf %41, %41 : vector<8x60xf32>
    %cst_18 = arith.constant dense<0.000000e+00> : vector<60xf32>
    %49 = vector.multi_reduction <add>, %48, %cst_18 [0] : vector<8x60xf32> to vector<60xf32>
    %50 = vector.shape_cast %49 : vector<60xf32> to vector<1x60xf32>
    %cst_19 = arith.constant 8.000000e+00 : f32
    %51 = vector.broadcast %cst_19 : f32 to vector<1x60xf32>
    %52 = arith.divf %50, %51 : vector<1x60xf32>
    %53 = arith.mulf %47, %47 : vector<1x60xf32>
    %54 = arith.subf %52, %53 : vector<1x60xf32>
    %cst_20 = arith.constant 9.99999974E-6 : f32
    %55 = vector.broadcast %cst_20 : f32 to vector<1x60xf32>
    %56 = arith.addf %54, %55 : vector<1x60xf32>
    %57 = math.rsqrt %56 : vector<1x60xf32>
    %58 = arith.mulf %42, %57 : vector<1x60xf32>
    %59 = arith.mulf %47, %58 : vector<1x60xf32>
    %60 = arith.subf %43, %59 : vector<1x60xf32>
    %61 = vector.broadcast %58 : vector<1x60xf32> to vector<8x60xf32>
    %62 = arith.mulf %41, %61 : vector<8x60xf32>
    %63 = vector.broadcast %60 : vector<1x60xf32> to vector<8x60xf32>
    %64 = arith.addf %62, %63 : vector<8x60xf32>
    %65 = tpu.iota {dimensions = array<i32: 1>} : vector<8x60xi32>
    %c30_i32 = arith.constant 30 : i32
    %66 = vector.broadcast %c30_i32 : i32 to vector<8x60xi32>
    %67 = arith.cmpi slt, %65, %66 : vector<8x60xi32>
    %cst_21 = arith.constant 0.000000e+00 : f32
    %68 = vector.broadcast %cst_21 : f32 to vector<8x60xf32>
    %69 = arith.maximumf %64, %68 : vector<8x60xf32>
    %cst_22 = arith.constant 2.000000e+01 : f32
    %70 = vector.broadcast %cst_22 : f32 to vector<8x60xf32>
    %71 = arith.cmpf ogt, %64, %70 : vector<8x60xf32>
    %cst_23 = arith.constant 2.000000e+01 : f32
    %72 = vector.broadcast %cst_23 : f32 to vector<8x60xf32>
    %73 = arith.minimumf %64, %72 : vector<8x60xf32>
    %74 = math.exp %73 : vector<8x60xf32>
    %75 = math.log1p %74 : vector<8x60xf32>
    %76 = arith.select %71, %64, %75 : vector<8x60xi1>, vector<8x60xf32>
    %77 = arith.select %67, %69, %76 : vector<8x60xi1>, vector<8x60xf32>
    %c0_24 = arith.constant 0 : index
    %c0_25 = arith.constant 0 : index
    %78 = vector.load %arg3[%c0_24, %c0_25] : memref<60x30xf32, #tpu.memory_space<vmem>>, vector<60x30xf32>
    %cst_26 = arith.constant dense<0.000000e+00> : vector<8x30xf32>
    %79 = tpu.matmul %77, %78, %cst_26 {dimension_numbers = #tpu.dot_dimension_numbers<[1], [0], [0], [1], [0, 0, 1, 1], [], []>} : vector<8x60xf32>, vector<60x30xf32>, vector<8x30xf32> -> vector<8x30xf32>
    %80 = vector.extract_strided_slice %1 {offsets = [4, 0], sizes = [1, 30], strides = [1, 1]} : vector<8x180xf32> to vector<1x30xf32>
    %81 = vector.extract_strided_slice %1 {offsets = [5, 0], sizes = [1, 30], strides = [1, 1]} : vector<8x180xf32> to vector<1x30xf32>
    %cst_27 = arith.constant dense<0.000000e+00> : vector<30xf32>
    %82 = vector.multi_reduction <add>, %79, %cst_27 [0] : vector<8x30xf32> to vector<30xf32>
    %83 = vector.shape_cast %82 : vector<30xf32> to vector<1x30xf32>
    %cst_28 = arith.constant 8.000000e+00 : f32
    %84 = vector.broadcast %cst_28 : f32 to vector<1x30xf32>
    %85 = arith.divf %83, %84 : vector<1x30xf32>
    %86 = arith.mulf %79, %79 : vector<8x30xf32>
    %cst_29 = arith.constant dense<0.000000e+00> : vector<30xf32>
    %87 = vector.multi_reduction <add>, %86, %cst_29 [0] : vector<8x30xf32> to vector<30xf32>
    %88 = vector.shape_cast %87 : vector<30xf32> to vector<1x30xf32>
    %cst_30 = arith.constant 8.000000e+00 : f32
    %89 = vector.broadcast %cst_30 : f32 to vector<1x30xf32>
    %90 = arith.divf %88, %89 : vector<1x30xf32>
    %91 = arith.mulf %85, %85 : vector<1x30xf32>
    %92 = arith.subf %90, %91 : vector<1x30xf32>
    %cst_31 = arith.constant 9.99999974E-6 : f32
    %93 = vector.broadcast %cst_31 : f32 to vector<1x30xf32>
    %94 = arith.addf %92, %93 : vector<1x30xf32>
    %95 = math.rsqrt %94 : vector<1x30xf32>
    %96 = arith.mulf %80, %95 : vector<1x30xf32>
    %97 = arith.mulf %85, %96 : vector<1x30xf32>
    %98 = arith.subf %81, %97 : vector<1x30xf32>
    %99 = vector.broadcast %96 : vector<1x30xf32> to vector<8x30xf32>
    %100 = arith.mulf %79, %99 : vector<8x30xf32>
    %101 = vector.broadcast %98 : vector<1x30xf32> to vector<8x30xf32>
    %102 = arith.addf %100, %101 : vector<8x30xf32>
    %103 = tpu.iota {dimensions = array<i32: 1>} : vector<8x30xi32>
    %c15_i32 = arith.constant 15 : i32
    %104 = vector.broadcast %c15_i32 : i32 to vector<8x30xi32>
    %105 = arith.cmpi slt, %103, %104 : vector<8x30xi32>
    %cst_32 = arith.constant 0.000000e+00 : f32
    %106 = vector.broadcast %cst_32 : f32 to vector<8x30xf32>
    %107 = arith.maximumf %102, %106 : vector<8x30xf32>
    %cst_33 = arith.constant 2.000000e+01 : f32
    %108 = vector.broadcast %cst_33 : f32 to vector<8x30xf32>
    %109 = arith.cmpf ogt, %102, %108 : vector<8x30xf32>
    %cst_34 = arith.constant 2.000000e+01 : f32
    %110 = vector.broadcast %cst_34 : f32 to vector<8x30xf32>
    %111 = arith.minimumf %102, %110 : vector<8x30xf32>
    %112 = math.exp %111 : vector<8x30xf32>
    %113 = math.log1p %112 : vector<8x30xf32>
    %114 = arith.select %109, %102, %113 : vector<8x30xi1>, vector<8x30xf32>
    %115 = arith.select %105, %107, %114 : vector<8x30xi1>, vector<8x30xf32>
    %c0_35 = arith.constant 0 : index
    %c0_36 = arith.constant 0 : index
    %116 = vector.load %arg4[%c0_35, %c0_36] : memref<30x128xf32, #tpu.memory_space<vmem>>, vector<30x128xf32>
    %cst_37 = arith.constant dense<0.000000e+00> : vector<8x128xf32>
    %117 = tpu.matmul %115, %116, %cst_37 {dimension_numbers = #tpu.dot_dimension_numbers<[1], [0], [0], [1], [0, 0, 1, 1], [], []>} : vector<8x30xf32>, vector<30x128xf32>, vector<8x128xf32> -> vector<8x128xf32>
    %118 = vector.extract_strided_slice %1 {offsets = [6, 0], sizes = [1, 128], strides = [1, 1]} : vector<8x180xf32> to vector<1x128xf32>
    %119 = vector.broadcast %118 : vector<1x128xf32> to vector<8x128xf32>
    %120 = arith.addf %117, %119 : vector<8x128xf32>
    %cst_38 = arith.constant 0.000000e+00 : f32
    %121 = vector.broadcast %cst_38 : f32 to vector<8x128xf32>
    %122 = arith.maximumf %120, %121 : vector<8x128xf32>
    %c0_39 = arith.constant 0 : index
    %c0_40 = arith.constant 0 : index
    %123 = vector.load %arg6[%c0_39, %c0_40] : memref<8x128xf32, #tpu.memory_space<vmem>>, vector<8x128xf32>
    tpu.vector_store %arg6[%c0_39, %c0_40], %122 {strides = array<i32>} : memref<8x128xf32, #tpu.memory_space<vmem>>, vector<8x128xf32>,
    return
  }
}

</mosaic_0001>

<llo_original>
// kernel: tpu_custom_call.1
$region0: #{tpu_custom_call.1}
  #allocation0 [shape = 'u32[]', space=smem, size = 0x4, offset = 0x4, fixed_abs, tag = 'smem constant byte address 0x4 - core index']
  #allocation1 [shape = 'u32[144,128]{1,0:T(1,128)}', space=vmem, size = 0x12000, scoped, tag = 'internal scratch']
  %s0 = inlined_call_operand.vmem [shape: f32[8,29], index: 0, kind: input, shape index: {}]
  %s1 = inlined_call_operand.vmem [shape: f32[29,180], index: 1, kind: input, shape index: {}]
  %s2 = inlined_call_operand.vmem [shape: f32[180,60], index: 2, kind: input, shape index: {}]
  %s3 = inlined_call_operand.vmem [shape: f32[60,30], index: 3, kind: input, shape index: {}]
  %s4 = inlined_call_operand.vmem [shape: f32[30,128], index: 4, kind: input, shape index: {}]
  %s5 = inlined_call_operand.vmem [shape: f32[8,180], index: 5, kind: input, shape index: {}]
  %s6 = inlined_call_operand.hbm [shape: f32[8,128], index: 6, kind: output, shape index: {}]
  %s7 = sld [smem:[#allocation0]]
  $region34: #{tpu_custom_call.1} parent=0
    _
  %s9 = ssub.s32 1, %s7
  %s10 = scalar_select 0, %s9, %s7
  $region1: #{tpu_custom_call.1} parent=0
    #allocation2 [shape = 'u8[4096]{0}', space=vmem, size = 0x1000, scoped, tag = 'output window, operand 0, single buffered']
    #allocation3 [shape = 's32[1]{0}', space=sflag, size = 0x4, scoped, tag = 'scoped memory for tpu_custom_call.1']
    %11 = vsyncpa [#allocation3], 0
    // Predicated region
    $region2: #{tpu_custom_call.1} parent=1 // pred_check
      _
    $region3: #{tpu_custom_call.1} parent=1 // pred_check_branch
      %13 = sbr.rel (0) target = $region5
    $region4: #{tpu_custom_call.1} parent=1 // pred_region
      _
    $region5: #{tpu_custom_call.1} parent=1 // pred_fallthru
      _
    // Predicated region
    $region6: #{tpu_custom_call.1} parent=1 // pred_check
      _
    $region7: #{tpu_custom_call.1} parent=1 // pred_check_branch
      %15 = sbr.rel (0) target = $region9
    $region8: #{tpu_custom_call.1} parent=1 // pred_region
      _
    $region9: #{tpu_custom_call.1} parent=1 // pred_fallthru
      _
    // Predicated region
    $region10: #{tpu_custom_call.1} parent=1 // pred_check
      _
    $region11: #{tpu_custom_call.1} parent=1 // pred_check_branch
      %17 = sbr.rel (0) target = $region13
    $region12: #{tpu_custom_call.1} parent=1 // pred_region
      _
    $region13: #{tpu_custom_call.1} parent=1 // pred_fallthru
      _
    // Predicated region
    $region14: #{tpu_custom_call.1} parent=1 // pred_check
      _
    $region15: #{tpu_custom_call.1} parent=1 // pred_check_branch
      %19 = sbr.rel (0) target = $region17
    $region16: #{tpu_custom_call.1} parent=1 // pred_region
      _
    $region17: #{tpu_custom_call.1} parent=1 // pred_fallthru
      _
    // Predicated region
    $region18: #{tpu_custom_call.1} parent=1 // pred_check
      _
    $region19: #{tpu_custom_call.1} parent=1 // pred_check_branch
      %21 = sbr.rel (0) target = $region21
    $region20: #{tpu_custom_call.1} parent=1 // pred_region
      _
    $region21: #{tpu_custom_call.1} parent=1 // pred_fallthru
      _
    // Predicated region
    $region22: #{tpu_custom_call.1} parent=1 // pred_check
      _
    $region23: #{tpu_custom_call.1} parent=1 // pred_check_branch
      %23 = sbr.rel (0) target = $region25
    $region24: #{tpu_custom_call.1} parent=1 // pred_region
      _
    $region25: #{tpu_custom_call.1} parent=1 // pred_fallthru
      _
    %v24 = vld [vmem:[%s0] sm:$0xff]
    %v25 = vld [vmem:[%s5] sm:$0xff]
    %v26 = vld [vmem:[%s5 + $0x8] sm:$0xff]
    %v27 = vld [vmem:[%s1] sm:$0xff]
    %v28 = vld [vmem:[%s1 + $0x8] sm:$0xff]
    %v29 = vld [vmem:[%s1 + $0x10] sm:$0xff]
    %v30 = vld [vmem:[%s1 + $0x18] sm:$0xff]
    %v31 = vld [vmem:[%s1 + $0x20] sm:$0xff]
    %v32 = vld [vmem:[%s1 + $0x28] sm:$0xff]
    %v33 = vld [vmem:[%s1 + $0x30] sm:$0x1f]
    %v34 = vld [vmem:[%s1 + $0x38] sm:$0x1f]
    %vm35 = vcmask 236544
    %v37 = vsel %vm35, %v24, 0
    %vm39 = vcmask 1044480
    %v41 = vsel %vm39, %v33, 0
    %v44 = vsel %vm39, %v34, 0
    %46 = vmatprep.subr.mxu0 0.0
    %47 = vmatpush1.msra.mxu0 0.0
    %48 = vmatprep.subr.mxu0 0.0
    %49 = vmatpush1.msra.mxu0 0.0
    %50 = vmatprep.subr.mxu0 0.0
    %51 = vmatpush1.msra.mxu0 0.0
    %52 = vmatprep.subr.mxu0 0.0
    %53 = vmatpush1.msra.mxu0 0.0
    %54 = vmatprep.subr.mxu0 0.0
    %55 = vmatpush1.msra.mxu0 0.0
    %56 = vmatprep.subr.mxu0 0.0
    %57 = vmatpush1.msra.mxu0 0.0
    %58 = vmatprep.subr.mxu0 0.0
    %59 = vmatpush1.msra.mxu0 0.0
    %60 = vmatprep.subr.mxu0 0.0
    %61 = vmatpush1.msra.mxu0 0.0
    %62 = vmatprep.subr.mxu0 0.0
    %63 = vmatpush1.msra.mxu0 0.0
    %64 = vmatprep.subr.mxu0 0.0
    %65 = vmatpush1.msra.mxu0 0.0
    %66 = vmatprep.subr.mxu0 0.0
    %67 = vmatpush1.msra.mxu0 0.0
    %68 = vmatprep.subr.mxu0 0.0
    %69 = vmatpush1.msra.mxu0 0.0
    %70 = vmatprep.subr.mxu0 %v44
    %71 = vmatpush1.msra.mxu0 %v41
    %72 = vmatprep.subr.mxu0 %v32
    %73 = vmatpush1.msra.mxu0 %v31
    %74 = vmatprep.subr.mxu0 %v30
    %75 = vmatpush1.msra.mxu0 %v29
    %76 = vmatprep.subr.mxu0 %v28
    %77 = vmatpush1.msra.mxu0 %v27
    %78 = vmatprep.subr.mxu0 0.0
    %79 = vmatpush2.msra.mxu0 0.0
    %80 = vmatprep.subr.mxu0 0.0
    %81 = vmatpush2.msra.mxu0 0.0
    %82 = vmatprep.subr.mxu0 0.0
    %83 = vmatpush2.msra.mxu0 0.0
    %84 = vmatprep.subr.mxu0 0.0
    %85 = vmatpush2.msra.mxu0 0.0
    %86 = vmatprep.subr.mxu0 0.0
    %87 = vmatpush2.msra.mxu0 0.0
    %88 = vmatprep.subr.mxu0 0.0
    %89 = vmatpush2.msra.mxu0 0.0
    %90 = vmatprep.subr.mxu0 0.0
    %91 = vmatpush2.msra.mxu0 0.0
    %92 = vmatprep.subr.mxu0 0.0
    %93 = vmatpush2.msra.mxu0 0.0
    %94 = vmatprep.subr.mxu0 0.0
    %95 = vmatpush2.msra.mxu0 0.0
    %96 = vmatprep.subr.mxu0 0.0
    %97 = vmatpush2.msra.mxu0 0.0
    %98 = vmatprep.subr.mxu0 0.0
    %99 = vmatpush2.msra.mxu0 0.0
    %100 = vmatprep.subr.mxu0 0.0
    %101 = vmatpush2.msra.mxu0 0.0
    %102 = vmatprep.subr.mxu0 0.0
    %103 = vmatpush2.msra.mxu0 0.0
    %104 = vmatprep.subr.mxu0 0.0
    %105 = vmatpush2.msra.mxu0 0.0
    %106 = vmatprep.subr.mxu0 0.0
    %107 = vmatpush2.msra.mxu0 0.0
    %108 = vmatprep.subr.mxu0 0.0
    %109 = vmatpush2.msra.mxu0 0.0
    %110 = vmatprep.mubr.f32.mxu0 0.0
    %111 = vmatmul.mubr.f32.gmra.mxu0 %v37
    %v112 = vpop.f32.mrf.mxu0
    %v113 = vadd.f32 0.0, %v112
    %v114 = vpop.f32.mrf.mxu0
    %v115 = vadd.f32 0.0, %v114
    %116 = vdwg.mxu0
    %v117 = vrot.slane %v113, 4
    %v118 = vadd.f32 %v113, %v117
    %v119 = vrot.slane %v118, 2
    %v120 = vadd.f32 %v118, %v119
    %v121 = vrot.slane %v120, 1
    %v122 = vadd.f32 %v120, %v121
    %vm123 = vcmask 424960
    %v124 = vsel %vm123, %v115, 0.0
    %v125 = vrot.slane %v124, 4
    %v126 = vadd.f32 %v124, %v125
    %v127 = vrot.slane %v126, 2
    %v128 = vadd.f32 %v126, %v127
    %v129 = vrot.slane %v128, 1
    %v130 = vadd.f32 %v128, %v129
    %v131 = vrcp.pop 8.0
    %v132 = vmul.f32 %v122, %v131
    %v133 = vmul.f32 %v130, %v131
    %v134 = vmul.f32 %v113, %v113
    %v135 = vmul.f32 %v115, %v115
    %v136 = vrot.slane %v134, 4
    %v137 = vadd.f32 %v134, %v136
    %v138 = vrot.slane %v137, 2
    %v139 = vadd.f32 %v137, %v138
    %v140 = vrot.slane %v139, 1
    %v141 = vadd.f32 %v139, %v140
    %v142 = vsel %vm123, %v135, 0.0
    %v143 = vrot.slane %v142, 4
    %v144 = vadd.f32 %v142, %v143
    %v145 = vrot.slane %v144, 2
    %v146 = vadd.f32 %v144, %v145
    %v147 = vrot.slane %v146, 1
    %v148 = vadd.f32 %v146, %v147
    %v149 = vmul.f32 %v141, %v131
    %v150 = vmul.f32 %v148, %v131
    %v151 = vmul.f32 %v132, %v132
    %v152 = vmul.f32 %v133, %v133
    %v153 = vsub.f32 %v149, %v151
    %v154 = vsub.f32 %v150, %v152
    %v155 = vadd.f32 %v153, 1e-05
    %v156 = vadd.f32 %v154, 1e-05
    %v157 = vrsqrt.pop %v155
    %v158 = vrsqrt.pop %v156
    %v159 = vmul.f32 %v25, %v157
    %v160 = vmul.f32 %v26, %v158
    %v161 = vmul.f32 %v132, %v159
    %v162 = vmul.f32 %v133, %v160
    %v165 = vrot.slane %v161, 7
    %v166 = vrot.slane %v162, 7
    %v169 = vsub.f32 %v25, %v165
    %v170 = vsub.f32 %v26, %v166
    %v171 = vlaneseq
    %v172 = vshrl.u32 %v171, 7
    %v173 = vsub.s32 0, %v172
    %v174 = vrot.slane %v159, %v173
    %v175 = vlaneseq
    %v176 = vshrl.u32 %v175, 7
    %v177 = vsub.s32 0, %v176
    %v178 = vrot.slane %v160, %v177
    %v179 = vmul.f32 %v113, %v174
    %v180 = vmul.f32 %v115, %v178
    %v181 = vlaneseq
    %v182 = vshrl.u32 %v181, 7
    %v183 = vsub.s32 1, %v182
    %v184 = vrot.slane %v169, %v183
    %v185 = vlaneseq
    %v186 = vshrl.u32 %v185, 7
    %v187 = vsub.s32 1, %v186
    %v188 = vrot.slane %v170, %v187
    %v189 = vadd.f32 %v179, %v184
    %v190 = vadd.f32 %v180, %v188
    %v191 = vlaneseq
    %v192 = vand.u32 %v191, 127
    %v193 = vadd.s32 %v192, 128
    %vm194 = vcmp.lt.s32.totalorder %v192, 90
    %vm195 = vcmp.lt.s32.totalorder %v193, 90
    %v196 = vmax.f32 %v189, 0.0
    %v197 = vmax.f32 %v190, 0.0
    %vm198 = vcmp.gt.f32.partialorder %v189, 20.0
    %vm199 = vcmp.gt.f32.partialorder %v190, 20.0
    %v200 = vmin.f32 %v189, 20.0
    %v201 = vmin.f32 %v190, 20.0
    %v202 = vmul.f32 %v200, 1.442695
    %v203 = vpow.pop %v202
    %v204 = vmul.f32 %v201, 1.442695
    %v205 = vpow.pop %v204
    %v206 = vadd.f32 %v203, 1.0
    %v207 = vlog2.pop %v206
    %v208 = vmul.f32 %v207, 0.6931472
    %v209 = vmul.f32 -0.5, %v203
    %v210 = vadd.f32 %v209, 1.0
    %v211 = vmul.f32 %v210, %v203
    %v212 = vand.u32 2147483647, %v203
    %vm213 = vcmp.lt.f32.partialorder %v212, 0.0004427343
    %v214 = vsel %vm213, %v211, %v208
    %v215 = vadd.f32 %v205, 1.0
    %v216 = vlog2.pop %v215
    %v217 = vmul.f32 %v216, 0.6931472
    %v218 = vmul.f32 -0.5, %v205
    %v219 = vadd.f32 %v218, 1.0
    %v220 = vmul.f32 %v219, %v205
    %v221 = vand.u32 2147483647, %v205
    %vm222 = vcmp.lt.f32.partialorder %v221, 0.0004427343
    %v223 = vsel %vm222, %v220, %v217
    %v224 = vsel %vm198, %v189, %v214
    %v225 = vsel %vm199, %v190, %v223
    %v226 = vsel %vm194, %v196, %v224
    %v227 = vsel %vm195, %v197, %v225
    %v228 = vld [vmem:[%s2] sm:$0xff]
    %v229 = vld [vmem:[%s2 + $0x8] sm:$0xff]
    %v230 = vld [vmem:[%s2 + $0x10] sm:$0xff]
    %v231 = vld [vmem:[%s2 + $0x18] sm:$0xff]
    %v232 = vld [vmem:[%s2 + $0x20] sm:$0xff]
    %v233 = vld [vmem:[%s2 + $0x28] sm:$0xff]
    %v234 = vld [vmem:[%s2 + $0x30] sm:$0xff]
    %v235 = vld [vmem:[%s2 + $0x38] sm:$0xff]
    %v236 = vld [vmem:[%s2 + $0x40] sm:$0xff]
    %v237 = vld [vmem:[%s2 + $0x48] sm:$0xff]
    %v238 = vld [vmem:[%s2 + $0x50] sm:$0xff]
    %v239 = vld [vmem:[%s2 + $0x58] sm:$0xff]
    %v240 = vld [vmem:[%s2 + $0x60] sm:$0xff]
    %v241 = vld [vmem:[%s2 + $0x68] sm:$0xff]
    %v242 = vld [vmem:[%s2 + $0x70] sm:$0xff]
    %v243 = vld [vmem:[%s2 + $0x78] sm:$0xff]
    %v244 = vld [vmem:[%s2 + $0x80] sm:$0xff]
    %v245 = vld [vmem:[%s2 + $0x88] sm:$0xff]
    %v246 = vld [vmem:[%s2 + $0x90] sm:$0xff]
    %v247 = vld [vmem:[%s2 + $0x98] sm:$0xff]
    %v248 = vld [vmem:[%s2 + $0xa0] sm:$0xff]
    %v249 = vld [vmem:[%s2 + $0xa8] sm:$0xff]
    %v250 = vld [vmem:[%s2 + $0xb0] sm:$0xf]
    %v252 = vsel %vm123, %v227, 0
    %vm254 = vcmask 1043456
    %v256 = vsel %vm254, %v250, 0
    %258 = vmatprep.subr.mxu0 0.0
    %259 = vmatpush1.msra.mxu0 %v243
    %260 = vmatprep.subr.mxu0 0.0
    %261 = vmatpush1.msra.mxu0 %v242
    %262 = vmatprep.subr.mxu0 0.0
    %263 = vmatpush1.msra.mxu0 %v241
    %264 = vmatprep.subr.mxu0 0.0
    %265 = vmatpush1.msra.mxu0 %v240
    %266 = vmatprep.subr.mxu0 0.0
    %267 = vmatpush1.msra.mxu0 %v239
    %268 = vmatprep.subr.mxu0 0.0
    %269 = vmatpush1.msra.mxu0 %v238
    %270 = vmatprep.subr.mxu0 0.0
    %271 = vmatpush1.msra.mxu0 %v237
    %272 = vmatprep.subr.mxu0 0.0
    %273 = vmatpush1.msra.mxu0 %v236
    %274 = vmatprep.subr.mxu0 0.0
    %275 = vmatpush1.msra.mxu0 %v235
    %276 = vmatprep.subr.mxu0 0.0
    %277 = vmatpush1.msra.mxu0 %v234
    %278 = vmatprep.subr.mxu0 0.0
    %279 = vmatpush1.msra.mxu0 %v233
    %280 = vmatprep.subr.mxu0 0.0
    %281 = vmatpush1.msra.mxu0 %v232
    %282 = vmatprep.subr.mxu0 0.0
    %283 = vmatpush1.msra.mxu0 %v231
    %284 = vmatprep.subr.mxu0 0.0
    %285 = vmatpush1.msra.mxu0 %v230
    %286 = vmatprep.subr.mxu0 0.0
    %287 = vmatpush1.msra.mxu0 %v229
    %288 = vmatprep.subr.mxu0 0.0
    %289 = vmatpush1.msra.mxu0 %v228
    %290 = vmatprep.subr.mxu0 0.0
    %291 = vmatpush2.msra.mxu0 0.0
    %292 = vmatprep.subr.mxu0 0.0
    %293 = vmatpush2.msra.mxu0 0.0
    %294 = vmatprep.subr.mxu0 0.0
    %295 = vmatpush2.msra.mxu0 0.0
    %296 = vmatprep.subr.mxu0 0.0
    %297 = vmatpush2.msra.mxu0 0.0
    %298 = vmatprep.subr.mxu0 0.0
    %299 = vmatpush2.msra.mxu0 0.0
    %300 = vmatprep.subr.mxu0 0.0
    %301 = vmatpush2.msra.mxu0 0.0
    %302 = vmatprep.subr.mxu0 0.0
    %303 = vmatpush2.msra.mxu0 0.0
    %304 = vmatprep.subr.mxu0 0.0
    %305 = vmatpush2.msra.mxu0 0.0
    %306 = vmatprep.subr.mxu0 0.0
    %307 = vmatpush2.msra.mxu0 0.0
    %308 = vmatprep.subr.mxu0 0.0
    %309 = vmatpush2.msra.mxu0 %v256
    %310 = vmatprep.subr.mxu0 0.0
    %311 = vmatpush2.msra.mxu0 %v249
    %312 = vmatprep.subr.mxu0 0.0
    %313 = vmatpush2.msra.mxu0 %v248
    %314 = vmatprep.subr.mxu0 0.0
    %315 = vmatpush2.msra.mxu0 %v247
    %316 = vmatprep.subr.mxu0 0.0
    %317 = vmatpush2.msra.mxu0 %v246
    %318 = vmatprep.subr.mxu0 0.0
    %319 = vmatpush2.msra.mxu0 %v245
    %320 = vmatprep.subr.mxu0 0.0
    %321 = vmatpush2.msra.mxu0 %v244
    %322 = vmatprep.mubr.f32.mxu0 %v252
    %323 = vmatmul.mubr.f32.gmra.mxu0 %v226
    %v324 = vpop.f32.mrf.mxu0
    %v325 = vadd.f32 0.0, %v324
    %v326 = vpop.f32.mrf.mxu0
    %327 = vdwg.mxu0
    %vm328 = vcmask 490496
    %v329 = vsel %vm328, %v325, 0.0
    %v330 = vrot.slane %v329, 4
    %v331 = vadd.f32 %v329, %v330
    %v332 = vrot.slane %v331, 2
    %v333 = vadd.f32 %v331, %v332
    %v334 = vrot.slane %v333, 1
    %v335 = vadd.f32 %v333, %v334
    %v336 = vmul.f32 %v335, %v131
    %v337 = vmul.f32 %v325, %v325
    %v338 = vsel %vm328, %v337, 0.0
    %v339 = vrot.slane %v338, 4
    %v340 = vadd.f32 %v338, %v339
    %v341 = vrot.slane %v340, 2
    %v342 = vadd.f32 %v340, %v341
    %v343 = vrot.slane %v342, 1
    %v344 = vadd.f32 %v342, %v343
    %v345 = vmul.f32 %v344, %v131
    %v346 = vmul.f32 %v336, %v336
    %v347 = vsub.f32 %v345, %v346
    %v348 = vadd.f32 %v347, 1e-05
    %v349 = vrsqrt.pop %v348
    %v350 = vmul.f32 %v25, %v349
    %v351 = vmul.f32 %v336, %v350
    %v353 = vrot.slane %v351, 7
    %v355 = vsub.f32 %v25, %v353
    %v356 = vlaneseq
    %v357 = vshrl.u32 %v356, 7
    %v358 = vsub.s32 2, %v357
    %v359 = vrot.slane %v350, %v358
    %v360 = vmul.f32 %v325, %v359
    %v361 = vlaneseq
    %v362 = vshrl.u32 %v361, 7
    %v363 = vsub.s32 3, %v362
    %v364 = vrot.slane %v355, %v363
    %v365 = vadd.f32 %v360, %v364
    %vm366 = vcmp.lt.s32.totalorder %v192, 30
    %v367 = vmax.f32 %v365, 0.0
    %vm368 = vcmp.gt.f32.partialorder %v365, 20.0
    %v369 = vmin.f32 %v365, 20.0
    %v370 = vmul.f32 %v369, 1.442695
    %v371 = vpow.pop %v370
    %v372 = vadd.f32 %v371, 1.0
    %v373 = vlog2.pop %v372
    %v374 = vmul.f32 %v373, 0.6931472
    %v375 = vmul.f32 -0.5, %v371
    %v376 = vadd.f32 %v375, 1.0
    %v377 = vmul.f32 %v376, %v371
    %v378 = vand.u32 2147483647, %v371
    %vm379 = vcmp.lt.f32.partialorder %v378, 0.0004427343
    %v380 = vsel %vm379, %v377, %v374
    %v381 = vsel %vm368, %v365, %v380
    %v382 = vsel %vm366, %v367, %v381
    %v383 = vld [vmem:[%s3] sm:$0xff]
    %v384 = vld [vmem:[%s3 + $0x8] sm:$0xff]
    %v385 = vld [vmem:[%s3 + $0x10] sm:$0xff]
    %v386 = vld [vmem:[%s3 + $0x18] sm:$0xff]
    %v387 = vld [vmem:[%s3 + $0x20] sm:$0xff]
    %v388 = vld [vmem:[%s3 + $0x28] sm:$0xff]
    %v389 = vld [vmem:[%s3 + $0x30] sm:$0xff]
    %v390 = vld [vmem:[%s3 + $0x38] sm:$0xf]
    %v392 = vsel %vm328, %v382, 0
    %v395 = vsel %vm254, %v390, 0
    %397 = vmatprep.subr.mxu0 0.0
    %398 = vmatpush1.msra.mxu0 0.0
    %399 = vmatprep.subr.mxu0 0.0
    %400 = vmatpush1.msra.mxu0 0.0
    %401 = vmatprep.subr.mxu0 0.0
    %402 = vmatpush1.msra.mxu0 0.0
    %403 = vmatprep.subr.mxu0 0.0
    %404 = vmatpush1.msra.mxu0 0.0
    %405 = vmatprep.subr.mxu0 0.0
    %406 = vmatpush1.msra.mxu0 0.0
    %407 = vmatprep.subr.mxu0 0.0
    %408 = vmatpush1.msra.mxu0 0.0
    %409 = vmatprep.subr.mxu0 0.0
    %410 = vmatpush1.msra.mxu0 0.0
    %411 = vmatprep.subr.mxu0 0.0
    %412 = vmatpush1.msra.mxu0 0.0
    %413 = vmatprep.subr.mxu0 0.0
    %414 = vmatpush1.msra.mxu0 %v395
    %415 = vmatprep.subr.mxu0 0.0
    %416 = vmatpush1.msra.mxu0 %v389
    %417 = vmatprep.subr.mxu0 0.0
    %418 = vmatpush1.msra.mxu0 %v388
    %419 = vmatprep.subr.mxu0 0.0
    %420 = vmatpush1.msra.mxu0 %v387
    %421 = vmatprep.subr.mxu0 0.0
    %422 = vmatpush1.msra.mxu0 %v386
    %423 = vmatprep.subr.mxu0 0.0
    %424 = vmatpush1.msra.mxu0 %v385
    %425 = vmatprep.subr.mxu0 0.0
    %426 = vmatpush1.msra.mxu0 %v384
    %427 = vmatprep.subr.mxu0 0.0
    %428 = vmatpush1.msra.mxu0 %v383
    %429 = vmatprep.subr.mxu0 0.0
    %430 = vmatpush2.msra.mxu0 0.0
    %431 = vmatprep.subr.mxu0 0.0
    %432 = vmatpush2.msra.mxu0 0.0
    %433 = vmatprep.subr.mxu0 0.0
    %434 = vmatpush2.msra.mxu0 0.0
    %435 = vmatprep.subr.mxu0 0.0
    %436 = vmatpush2.msra.mxu0 0.0
    %437 = vmatprep.subr.mxu0 0.0
    %438 = vmatpush2.msra.mxu0 0.0
    %439 = vmatprep.subr.mxu0 0.0
    %440 = vmatpush2.msra.mxu0 0.0
    %441 = vmatprep.subr.mxu0 0.0
    %442 = vmatpush2.msra.mxu0 0.0
    %443 = vmatprep.subr.mxu0 0.0
    %444 = vmatpush2.msra.mxu0 0.0
    %445 = vmatprep.subr.mxu0 0.0
    %446 = vmatpush2.msra.mxu0 0.0
    %447 = vmatprep.subr.mxu0 0.0
    %448 = vmatpush2.msra.mxu0 0.0
    %449 = vmatprep.subr.mxu0 0.0
    %450 = vmatpush2.msra.mxu0 0.0
    %451 = vmatprep.subr.mxu0 0.0
    %452 = vmatpush2.msra.mxu0 0.0
    %453 = vmatprep.subr.mxu0 0.0
    %454 = vmatpush2.msra.mxu0 0.0
    %455 = vmatprep.subr.mxu0 0.0
    %456 = vmatpush2.msra.mxu0 0.0
    %457 = vmatprep.subr.mxu0 0.0
    %458 = vmatpush2.msra.mxu0 0.0
    %459 = vmatprep.subr.mxu0 0.0
    %460 = vmatpush2.msra.mxu0 0.0
    %461 = vmatprep.mubr.f32.mxu0 0.0
    %462 = vmatmul.mubr.f32.gmra.mxu0 %v392
    %v463 = vpop.f32.mrf.mxu0
    %v464 = vadd.f32 0.0, %v463
    %v465 = vpop.f32.mrf.mxu0
    %466 = vdwg.mxu0
    %vm467 = vcmask 244736
    %v468 = vsel %vm467, %v464, 0.0
    %v469 = vrot.slane %v468, 4
    %v470 = vadd.f32 %v468, %v469
    %v471 = vrot.slane %v470, 2
    %v472 = vadd.f32 %v470, %v471
    %v473 = vrot.slane %v472, 1
    %v474 = vadd.f32 %v472, %v473
    %v475 = vmul.f32 %v474, %v131
    %v476 = vmul.f32 %v464, %v464
    %v477 = vsel %vm467, %v476, 0.0
    %v478 = vrot.slane %v477, 4
    %v479 = vadd.f32 %v477, %v478
    %v480 = vrot.slane %v479, 2
    %v481 = vadd.f32 %v479, %v480
    %v482 = vrot.slane %v481, 1
    %v483 = vadd.f32 %v481, %v482
    %v484 = vmul.f32 %v483, %v131
    %v485 = vmul.f32 %v475, %v475
    %v486 = vsub.f32 %v484, %v485
    %v487 = vadd.f32 %v486, 1e-05
    %v488 = vrsqrt.pop %v487
    %v489 = vmul.f32 %v25, %v488
    %v490 = vmul.f32 %v475, %v489
    %v492 = vrot.slane %v490, 7
    %v494 = vsub.f32 %v25, %v492
    %v495 = vlaneseq
    %v496 = vshrl.u32 %v495, 7
    %v497 = vsub.s32 4, %v496
    %v498 = vrot.slane %v489, %v497
    %v499 = vmul.f32 %v464, %v498
    %v500 = vlaneseq
    %v501 = vshrl.u32 %v500, 7
    %v502 = vsub.s32 5, %v501
    %v503 = vrot.slane %v494, %v502
    %v504 = vadd.f32 %v499, %v503
    %vm505 = vcmp.lt.s32.totalorder %v192, 15
    %v506 = vmax.f32 %v504, 0.0
    %vm507 = vcmp.gt.f32.partialorder %v504, 20.0
    %v508 = vmin.f32 %v504, 20.0
    %v509 = vmul.f32 %v508, 1.442695
    %v510 = vpow.pop %v509
    %v511 = vadd.f32 %v510, 1.0
    %v512 = vlog2.pop %v511
    %v513 = vmul.f32 %v512, 0.6931472
    %v514 = vmul.f32 -0.5, %v510
    %v515 = vadd.f32 %v514, 1.0
    %v516 = vmul.f32 %v515, %v510
    %v517 = vand.u32 2147483647, %v510
    %vm518 = vcmp.lt.f32.partialorder %v517, 0.0004427343
    %v519 = vsel %vm518, %v516, %v513
    %v520 = vsel %vm507, %v504, %v519
    %v521 = vsel %vm505, %v506, %v520
    %v522 = vld [vmem:[%s4] sm:$0xff]
    %v523 = vld [vmem:[%s4 + $0x8] sm:$0xff]
    %v524 = vld [vmem:[%s4 + $0x10] sm:$0xff]
    %v525 = vld [vmem:[%s4 + $0x18] sm:$0x3f]
    %v526 = vlaneseq
    %v527 = vshrl.u32 %v526, 7
    %v528 = vsub.s32 6, %v527
    %v529 = vrot.slane %v25, %v528
    %v531 = vsel %vm467, %v521, 0
    %vm533 = vcmask 1045504
    %v535 = vsel %vm533, %v525, 0
    %537 = vmatprep.subr.mxu0 0.0
    %538 = vmatpush1.msra.mxu0 0.0
    %539 = vmatprep.subr.mxu0 0.0
    %540 = vmatpush1.msra.mxu0 0.0
    %541 = vmatprep.subr.mxu0 0.0
    %542 = vmatpush1.msra.mxu0 0.0
    %543 = vmatprep.subr.mxu0 0.0
    %544 = vmatpush1.msra.mxu0 0.0
    %545 = vmatprep.subr.mxu0 0.0
    %546 = vmatpush1.msra.mxu0 0.0
    %547 = vmatprep.subr.mxu0 0.0
    %548 = vmatpush1.msra.mxu0 0.0
    %549 = vmatprep.subr.mxu0 0.0
    %550 = vmatpush1.msra.mxu0 0.0
    %551 = vmatprep.subr.mxu0 0.0
    %552 = vmatpush1.msra.mxu0 0.0
    %553 = vmatprep.subr.mxu0 0.0
    %554 = vmatpush1.msra.mxu0 0.0
    %555 = vmatprep.subr.mxu0 0.0
    %556 = vmatpush1.msra.mxu0 0.0
    %557 = vmatprep.subr.mxu0 0.0
    %558 = vmatpush1.msra.mxu0 0.0
    %559 = vmatprep.subr.mxu0 0.0
    %560 = vmatpush1.msra.mxu0 0.0
    %561 = vmatprep.subr.mxu0 0.0
    %562 = vmatpush1.msra.mxu0 %v535
    %563 = vmatprep.subr.mxu0 0.0
    %564 = vmatpush1.msra.mxu0 %v524
    %565 = vmatprep.subr.mxu0 0.0
    %566 = vmatpush1.msra.mxu0 %v523
    %567 = vmatprep.subr.mxu0 0.0
    %568 = vmatpush1.msra.mxu0 %v522
    %569 = vmatprep.subr.mxu0 0.0
    %570 = vmatpush2.msra.mxu0 0.0
    %571 = vmatprep.subr.mxu0 0.0
    %572 = vmatpush2.msra.mxu0 0.0
    %573 = vmatprep.subr.mxu0 0.0
    %574 = vmatpush2.msra.mxu0 0.0
    %575 = vmatprep.subr.mxu0 0.0
    %576 = vmatpush2.msra.mxu0 0.0
    %577 = vmatprep.subr.mxu0 0.0
    %578 = vmatpush2.msra.mxu0 0.0
    %579 = vmatprep.subr.mxu0 0.0
    %580 = vmatpush2.msra.mxu0 0.0
    %581 = vmatprep.subr.mxu0 0.0
    %582 = vmatpush2.msra.mxu0 0.0
    %583 = vmatprep.subr.mxu0 0.0
    %584 = vmatpush2.msra.mxu0 0.0
    %585 = vmatprep.subr.mxu0 0.0
    %586 = vmatpush2.msra.mxu0 0.0
    %587 = vmatprep.subr.mxu0 0.0
    %588 = vmatpush2.msra.mxu0 0.0
    %589 = vmatprep.subr.mxu0 0.0
    %590 = vmatpush2.msra.mxu0 0.0
    %591 = vmatprep.subr.mxu0 0.0
    %592 = vmatpush2.msra.mxu0 0.0
    %593 = vmatprep.subr.mxu0 0.0
    %594 = vmatpush2.msra.mxu0 0.0
    %595 = vmatprep.subr.mxu0 0.0
    %596 = vmatpush2.msra.mxu0 0.0
    %597 = vmatprep.subr.mxu0 0.0
    %598 = vmatpush2.msra.mxu0 0.0
    %599 = vmatprep.subr.mxu0 0.0
    %600 = vmatpush2.msra.mxu0 0.0
    %601 = vmatprep.mubr.f32.mxu0 0.0
    %602 = vmatmul.mubr.f32.gmra.mxu0 %v531
    %v603 = vpop.f32.mrf.mxu0
    %v604 = vadd.f32 %v529, %v603
    %v605 = vpop.f32.mrf.mxu0
    %606 = vdwg.mxu0
    %v607 = vmax.f32 %v604, 0.0
    %608 = vst [vmem:[#allocation2] sm:$0xff] %v607
    // Predicated region
    $region26: #{tpu_custom_call.1} parent=1 // pred_check
      _
    $region27: #{tpu_custom_call.1} parent=1 // pred_check_branch
      %610 = sbr.rel (0) target = $region29
    $region28: #{tpu_custom_call.1} parent=1 // pred_region
      %s612 = ssub.s32 128, 128
      %613 = vsyncadd [#allocation3], %s612
      %s615 = sshll.u32 [#allocation2], 4
      %s616 = int_to_ptr.vmem [resolvable:$true] %s615
      %618 = dma.vmem_to_hbm [thread:$0]  %s616, 128, %s6, [#allocation3]
    $region29: #{tpu_custom_call.1} parent=1 // pred_fallthru
      _
    // Predicated region
    $region30: #{tpu_custom_call.1} parent=1 // pred_check
      _
    $region31: #{tpu_custom_call.1} parent=1 // pred_check_branch
      %620 = sbr.rel (0) target = $region33
    $region32: #{tpu_custom_call.1} parent=1 // pred_region
      %621 = dma.done [#allocation3], 128
    $region33: #{tpu_custom_call.1} parent=1 // pred_fallthru
      _
    %622 = vsyncpa [#allocation3], 1

</llo_original>
